<compile_context>
chip_gen: v5e
topology: v5e:2x2
jax: 0.10.0
libtpu: 0.0.40
codegen_flags: <defaults>
</compile_context>

<pallas_src>
import functools

import jax
import jax.numpy as jnp
from jax import lax
from jax.experimental import pallas as pl
from jax.experimental.pallas import tpu as pltpu


LANES = 128
BLOCK_ROWS_MAX = 8192     # 8192 x 128 f32 = 4 MiB per input per grid step
CHUNK_ROWS = 256          # inner streaming chunk: 256 x 128 f32 = 32 vregs
VMEM_LIMIT_BYTES = 32 * 1024 * 1024


def _round_up(x: int, m: int) -> int:
    return ((x + m - 1) // m) * m


def _sublane_multiple(dtype) -> int:
    """Native sublane packing: (8,128) for f32, (16,128) bf16, (32,128) int8/fp8."""
    itemsize = jnp.dtype(dtype).itemsize
    if itemsize >= 4:
        return 8
    if itemsize == 2:
        return 16
    return 32


def _num_tensorcores() -> int:
    """Best-effort TensorCores-per-chip count (2 on v7x-class chips, else 1)."""
    try:
        info = pltpu.get_tpu_info()
        for attr in ("num_tensorcores", "tensorcore_count", "num_tensor_cores",
                     "tensor_cores_per_chip", "num_cores_per_chip"):
            v = getattr(info, attr, None)
            if isinstance(v, int) and not isinstance(v, bool) and v >= 1:
                return min(int(v), 2)
    except Exception:
        pass
    try:
        kind = jax.devices()[0].device_kind.lower()
        if "v7" in kind or "7x" in kind:
            return 2
    except Exception:
        pass
    return 1


def _dice_partial_kernel(p_ref, t_ref, acc_ref, *,
                         rows_valid, block_rows, chunk_rows,
                         tiles_per_core, needs_mask):
    """Accumulates per-core partial sums of (p*t, p, t) into a (3, 8, 128) block.

    acc_ref is the kernel output and stays resident in VMEM across the inner
    ("arbitrary") grid axis; the inner loop is pure VPU adds.
    """
    c = pl.program_id(0)   # core shard
    j = pl.program_id(1)   # row tile within this core's shard

    @pl.when(j == 0)
    def _():
        acc_ref[...] = jnp.zeros_like(acc_ref)

    groups = chunk_rows // 8
    num_chunks = block_rows // chunk_rows
    unroll = num_chunks <= 8

    def accumulate(pf, tf):
        # (chunk_rows, 128) -> (8, 128): tile-aligned reshape + vector adds only;
        # the single cross-lane/sublane reduction happens once, in the wrapper.
        acc_ref[0] += (pf * tf).reshape(groups, 8, LANES).sum(axis=0)
        acc_ref[1] += pf.reshape(groups, 8, LANES).sum(axis=0)
        acc_ref[2] += tf.reshape(groups, 8, LANES).sum(axis=0)

    def unmasked_body(i, carry):
        r0 = pl.multiple_of(i * chunk_rows, chunk_rows)
        accumulate(p_ref[pl.ds(r0, chunk_rows), :].astype(jnp.float32),
                   t_ref[pl.ds(r0, chunk_rows), :].astype(jnp.float32))
        return carry

    def run_unmasked():
        lax.fori_loop(0, num_chunks, unmasked_body, 0, unroll=unroll)

    if not needs_mask:
        run_unmasked()
        return

    # Valid rows in this tile: == block_rows in steady state, < block_rows on
    # the tail tile, <= 0 on clamped duplicate tiles.
    limit = rows_valid - (c * tiles_per_core + j) * block_rows

    @pl.when(limit >= block_rows)
    def _():                       # steady state: completely mask-free
        run_unmasked()

    @pl.when(limit < block_rows)
    def _():                       # tail / clamped-duplicate tile only
        row_iota = lax.broadcasted_iota(jnp.int32, (chunk_rows, LANES), 0)

        def masked_body(i, carry):
            r0 = pl.multiple_of(i * chunk_rows, chunk_rows)
            valid = row_iota < (limit - r0)
            pf = p_ref[pl.ds(r0, chunk_rows), :].astype(jnp.float32)
            tf = t_ref[pl.ds(r0, chunk_rows), :].astype(jnp.float32)
            # Select, NOT multiply-by-mask: the over-covering part of the VMEM
            # block may hold stale NaNs which would survive a *0.
            accumulate(jnp.where(valid, pf, 0.0), jnp.where(valid, tf, 0.0))
            return carry

        lax.fori_loop(0, num_chunks, masked_body, 0, unroll=unroll)


def _dice_partial_sums(p2, t2, *, num_cores):
    """Pallas reduction over (rows, 128) arrays -> (sum(p*t), sum(p), sum(t))."""
    rows = p2.shape[0]

    mult = max(_sublane_multiple(p2.dtype), _sublane_multiple(t2.dtype))
    if rows >= BLOCK_ROWS_MAX:
        block_rows, chunk_rows = BLOCK_ROWS_MAX, CHUNK_ROWS
    else:
        chunk_rows = min(CHUNK_ROWS, _round_up(rows, mult))
        block_rows = _round_up(rows, chunk_rows)

    n_tiles = pl.cdiv(rows, block_rows)
    num_cores = max(1, min(int(num_cores), n_tiles))
    tiles_per_core = pl.cdiv(n_tiles, num_cores)
    # Mask only when some (core, step) tile over-covers the data (ragged tail)
    # or maps past the last tile (clamped duplicate).
    needs_mask = num_cores * tiles_per_core * block_rows != rows

    kernel = functools.partial(
        _dice_partial_kernel,
        rows_valid=rows, block_rows=block_rows, chunk_rows=chunk_rows,
        tiles_per_core=tiles_per_core, needs_mask=needs_mask)

    def in_map(c, j):
        # Clamp out-of-range tile indices to the last valid tile; the in-kernel
        # mask zeroes their contribution.
        return (jnp.minimum(c * tiles_per_core + j, n_tiles - 1), 0)

    if num_cores > 1:
        # Real 2-TensorCore split (v7x-class chips).
        dims = (getattr(pltpu, "CORE_PARALLEL", "parallel"), "arbitrary")
    else:
        dims = ("arbitrary", "arbitrary")

    partials = pl.pallas_call(
        kernel,
        out_shape=jax.ShapeDtypeStruct((num_cores * 3, 8, LANES), jnp.float32),
        grid_spec=pltpu.PrefetchScalarGridSpec(
            num_scalar_prefetch=0,
            grid=(num_cores, tiles_per_core),
            in_specs=[
                pl.BlockSpec((block_rows, LANES), in_map),
                pl.BlockSpec((block_rows, LANES), in_map),
            ],
            # Per-core partial-sum block, resident across the inner axis.
            out_specs=pl.BlockSpec((3, 8, LANES), lambda c, j: (c, 0, 0)),
        ),
        compiler_params=pltpu.CompilerParams(
            dimension_semantics=dims,
            vmem_limit_bytes=VMEM_LIMIT_BYTES,
        ),
    )(p2, t2)

    # Tiny final cross-lane/sublane reduction on the host-side JAX graph.
    sums = partials.reshape(num_cores, 3, 8, LANES).sum(axis=(0, 2, 3))
    return sums[0], sums[1], sums[2]


def dice_loss(predictions, targets, smooth=1.0, num_cores=None):
    """Computes 1 - dice coefficient, matching PyTorch DiceLoss.forward."""
    p = jnp.reshape(predictions, (-1,))
    t = jnp.reshape(targets, (-1,))
    n = p.shape[0]
    if n == 0:
        # All sums are 0 -> dice = smooth/smooth = 1 -> loss 0.
        return jnp.float32(0.0)
    if num_cores is None:
        num_cores = _num_tensorcores()

    smooth = jnp.float32(smooth)
    n_main = (n // LANES) * LANES

    # Lane-ragged remainder (< 128 elements): reduced directly in plain JAX
    # instead of jnp.pad-ing full copies of both tensors through HBM.
    if n_main != n:
        p_tail = p[n_main:].astype(jnp.float32)
        t_tail = t[n_main:].astype(jnp.float32)
        inter = jnp.sum(p_tail * t_tail)
        p_sum = jnp.sum(p_tail)
        t_sum = jnp.sum(t_tail)
    else:
        inter = p_sum = t_sum = jnp.float32(0.0)

    if n_main > 0:
        # Lane-aligned n: these reshapes are free views.  Ragged n: the prefix
        # slice is one copy of the main body, still cheaper than the previous
        # full-tensor pad+copy of both inputs.
        p2 = (p if n_main == n else p[:n_main]).reshape(n_main // LANES, LANES)
        t2 = (t if n_main == n else t[:n_main]).reshape(n_main // LANES, LANES)
        ki, kp, kt = _dice_partial_sums(p2, t2, num_cores=num_cores)
        inter = inter + ki
        p_sum = p_sum + kp
        t_sum = t_sum + kt

    dice = (2.0 * inter + smooth) / (p_sum + t_sum + smooth)
    return (1.0 - dice).astype(jnp.float32)


if __name__ == "__main__":
    key = jax.random.PRNGKey(0)
    k1, k2 = jax.random.split(key)

    # predictions: sigmoid-like probabilities; targets: binary mask (NCHW).
    x = jax.nn.sigmoid(jax.random.normal(k1, (2, 4, 16, 16), dtype=jnp.float32))
    y = (jax.random.uniform(k2, (2, 4, 16, 16)) > 0.5).astype(jnp.float32)

    loss = jax.block_until_ready(dice_loss(x, y, smooth=1.0))

    # Plain-JAX reference for the same forward pass.
    pf = x.reshape(-1).astype(jnp.float32)
    tf = y.reshape(-1).astype(jnp.float32)
    ref = 1.0 - (2.0 * jnp.sum(pf * tf) + 1.0) / (jnp.sum(pf) + jnp.sum(tf) + 1.0)
    assert jnp.allclose(loss, ref, atol=1e-5, rtol=1e-5), (loss, ref)

    print("KERNEL_OK")
</pallas_src>

<mosaic_0001>
module attributes {stable_mosaic.version = 11 : i64} {
  func.func @_dice_partial_kernel(%arg0: i32, %arg1: i32, %arg2: memref<16x128xf32, #tpu.memory_space<vmem>>, %arg3: memref<16x128xf32, #tpu.memory_space<vmem>>, %arg4: memref<3x8x128xf32, #tpu.memory_space<vmem>>) attributes {dimension_semantics = [#tpu.dimension_semantics<arbitrary>, #tpu.dimension_semantics<arbitrary>], iteration_bounds = array<i64: 1, 1>, scalar_prefetch = 0 : i64, scratch_operands = 0 : i64, tpu.core_type = #tpu.core_type<tc>, window_params = [{transform_indices = @transform_0, window_bounds = array<i64: 16, 128>}, {transform_indices = @transform_1, window_bounds = array<i64: 16, 128>}, {transform_indices = @transform_2, window_bounds = array<i64: 3, 8, 128>}]} {
    %c0_i32 = arith.constant 0 : i32
    %0 = arith.cmpi eq, %arg1, %c0_i32 : i32
    %1 = arith.extui %0 : i1 to i32
    %c0_i32_0 = arith.constant 0 : i32
    %2 = arith.cmpi ne, %1, %c0_i32_0 : i32
    scf.if %2 {
      %cst_21 = arith.constant 0.000000e+00 : f32
      %34 = vector.broadcast %cst_21 : f32 to vector<3x8x128xf32>
      %c0_22 = arith.constant 0 : index
      %c0_23 = arith.constant 0 : index
      %c0_24 = arith.constant 0 : index
      %35 = vector.load %arg4[%c0_22, %c0_23, %c0_24] : memref<3x8x128xf32, #tpu.memory_space<vmem>>, vector<3x8x128xf32>
      tpu.vector_store %arg4[%c0_22, %c0_23, %c0_24], %34 {strides = array<i32>} : memref<3x8x128xf32, #tpu.memory_space<vmem>>, vector<3x8x128xf32>,
    } else {
    }
    %c0_i32_1 = arith.constant 0 : i32
    %c16_i32 = arith.constant 16 : i32
    %3 = arith.muli %c0_i32_1, %c16_i32 : i32
    %4 = tpu.assume_multiple %3, 16 : i32
    %5 = arith.index_cast %4 : i32 to index
    %c0 = arith.constant 0 : index
    %6 = vector.load %arg2[%5, %c0] : memref<16x128xf32, #tpu.memory_space<vmem>>, vector<16x128xf32>
    %7 = arith.index_cast %4 : i32 to index
    %c0_2 = arith.constant 0 : index
    %8 = vector.load %arg3[%7, %c0_2] : memref<16x128xf32, #tpu.memory_space<vmem>>, vector<16x128xf32>
    %c0_3 = arith.constant 0 : index
    %c0_4 = arith.constant 0 : index
    %c0_5 = arith.constant 0 : index
    %9 = vector.load %arg4[%c0_3, %c0_4, %c0_5] : memref<3x8x128xf32, #tpu.memory_space<vmem>>, vector<1x8x128xf32>
    %10 = vector.shape_cast %9 : vector<1x8x128xf32> to vector<8x128xf32>
    %11 = arith.mulf %6, %8 : vector<16x128xf32>
    %12 = vector.shape_cast %11 : vector<16x128xf32> to vector<2x8x128xf32>
    %cst = arith.constant dense<0.000000e+00> : vector<8x128xf32>
    %13 = vector.multi_reduction <add>, %12, %cst [0] : vector<2x8x128xf32> to vector<8x128xf32>
    %14 = arith.addf %10, %13 : vector<8x128xf32>
    %c0_6 = arith.constant 0 : index
    %c0_7 = arith.constant 0 : index
    %c0_8 = arith.constant 0 : index
    %15 = vector.load %arg4[%c0_6, %c0_7, %c0_8] : memref<3x8x128xf32, #tpu.memory_space<vmem>>, vector<1x8x128xf32>
    %16 = vector.shape_cast %15 : vector<1x8x128xf32> to vector<8x128xf32>
    %17 = vector.shape_cast %14 : vector<8x128xf32> to vector<1x8x128xf32>
    tpu.vector_store %arg4[%c0_6, %c0_7, %c0_8], %17 {strides = array<i32>} : memref<3x8x128xf32, #tpu.memory_space<vmem>>, vector<1x8x128xf32>,
    %c1 = arith.constant 1 : index
    %c0_9 = arith.constant 0 : index
    %c0_10 = arith.constant 0 : index
    %18 = vector.load %arg4[%c1, %c0_9, %c0_10] : memref<3x8x128xf32, #tpu.memory_space<vmem>>, vector<1x8x128xf32>
    %19 = vector.shape_cast %18 : vector<1x8x128xf32> to vector<8x128xf32>
    %20 = vector.shape_cast %6 : vector<16x128xf32> to vector<2x8x128xf32>
    %cst_11 = arith.constant dense<0.000000e+00> : vector<8x128xf32>
    %21 = vector.multi_reduction <add>, %20, %cst_11 [0] : vector<2x8x128xf32> to vector<8x128xf32>
    %22 = arith.addf %19, %21 : vector<8x128xf32>
    %c1_12 = arith.constant 1 : index
    %c0_13 = arith.constant 0 : index
    %c0_14 = arith.constant 0 : index
    %23 = vector.load %arg4[%c1_12, %c0_13, %c0_14] : memref<3x8x128xf32, #tpu.memory_space<vmem>>, vector<1x8x128xf32>
    %24 = vector.shape_cast %23 : vector<1x8x128xf32> to vector<8x128xf32>
    %25 = vector.shape_cast %22 : vector<8x128xf32> to vector<1x8x128xf32>
    tpu.vector_store %arg4[%c1_12, %c0_13, %c0_14], %25 {strides = array<i32>} : memref<3x8x128xf32, #tpu.memory_space<vmem>>, vector<1x8x128xf32>,
    %c2 = arith.constant 2 : index
    %c0_15 = arith.constant 0 : index
    %c0_16 = arith.constant 0 : index
    %26 = vector.load %arg4[%c2, %c0_15, %c0_16] : memref<3x8x128xf32, #tpu.memory_space<vmem>>, vector<1x8x128xf32>
    %27 = vector.shape_cast %26 : vector<1x8x128xf32> to vector<8x128xf32>
    %28 = vector.shape_cast %8 : vector<16x128xf32> to vector<2x8x128xf32>
    %cst_17 = arith.constant dense<0.000000e+00> : vector<8x128xf32>
    %29 = vector.multi_reduction <add>, %28, %cst_17 [0] : vector<2x8x128xf32> to vector<8x128xf32>
    %30 = arith.addf %27, %29 : vector<8x128xf32>
    %c2_18 = arith.constant 2 : index
    %c0_19 = arith.constant 0 : index
    %c0_20 = arith.constant 0 : index
    %31 = vector.load %arg4[%c2_18, %c0_19, %c0_20] : memref<3x8x128xf32, #tpu.memory_space<vmem>>, vector<1x8x128xf32>
    %32 = vector.shape_cast %31 : vector<1x8x128xf32> to vector<8x128xf32>
    %33 = vector.shape_cast %30 : vector<8x128xf32> to vector<1x8x128xf32>
    tpu.vector_store %arg4[%c2_18, %c0_19, %c0_20], %33 {strides = array<i32>} : memref<3x8x128xf32, #tpu.memory_space<vmem>>, vector<1x8x128xf32>,
    %c1_i32 = arith.constant 1 : i32
    return
  }
  func.func @transform_0(%arg0: i32, %arg1: i32) -> (i32, i32) {
    %c1_i32 = arith.constant 1 : i32
    %0 = arith.muli %arg0, %c1_i32 : i32
    %1 = arith.addi %0, %arg1 : i32
    %c0_i32 = arith.constant 0 : i32
    %2 = arith.minsi %1, %c0_i32 : i32
    %c0_i32_0 = arith.constant 0 : i32
    %c0_i32_1 = arith.constant 0 : i32
    return %2, %c0_i32_0 : i32, i32
  }
  func.func @transform_1(%arg0: i32, %arg1: i32) -> (i32, i32) {
    %c1_i32 = arith.constant 1 : i32
    %0 = arith.muli %arg0, %c1_i32 : i32
    %1 = arith.addi %0, %arg1 : i32
    %c0_i32 = arith.constant 0 : i32
    %2 = arith.minsi %1, %c0_i32 : i32
    %c0_i32_0 = arith.constant 0 : i32
    %c0_i32_1 = arith.constant 0 : i32
    return %2, %c0_i32_0 : i32, i32
  }
  func.func @transform_2(%arg0: i32, %arg1: i32) -> (i32, i32, i32) {
    %c0_i32 = arith.constant 0 : i32
    %c0_i32_0 = arith.constant 0 : i32
    %c0_i32_1 = arith.constant 0 : i32
    return %arg0, %c0_i32, %c0_i32_0 : i32, i32, i32
  }
}

</mosaic_0001>

<llo_original>
// kernel: tpu_custom_call.1
$region0: #{tpu_custom_call.1}
  #allocation0 [shape = 'u32[]', space=smem, size = 0x4, offset = 0x4, fixed_abs, tag = 'smem constant byte address 0x4 - core index']
  #allocation1 [shape = 'u32[72,128]{1,0:T(1,128)}', space=vmem, size = 0x9000, scoped, tag = 'internal scratch']
  %s0 = inlined_call_operand.hbm [shape: f32[16,128], index: 0, kind: input, shape index: {}]
  %s1 = inlined_call_operand.hbm [shape: f32[16,128], index: 1, kind: input, shape index: {}]
  %s2 = inlined_call_operand.hbm [shape: f32[3,8,128], index: 2, kind: output, shape index: {}]
  %s3 = sld [smem:[#allocation0]]
  $region30: #{tpu_custom_call.1} parent=0
    _
  %s5 = ssub.s32 1, %s3
  %s6 = scalar_select 0, %s5, %s3
  $region1: #{tpu_custom_call.1} parent=0
    #allocation2 [shape = 'u8[8192]{0}', space=vmem, size = 0x2000, scoped, tag = 'input window, operand 0, single buffered']
    #allocation3 [shape = 's32[1]{0}', space=sflag, size = 0x4, scoped, tag = 'scoped memory for tpu_custom_call.1']
    #allocation4 [shape = 's32[1]{0}', space=sflag, size = 0x4, scoped, tag = 'scoped memory for tpu_custom_call.1']
    #allocation5 [shape = 'u8[8192]{0}', space=vmem, size = 0x2000, scoped, tag = 'input window, operand 1, single buffered']
    #allocation6 [shape = 's32[1]{0}', space=sflag, size = 0x4, scoped, tag = 'scoped memory for tpu_custom_call.1']
    #allocation7 [shape = 'u8[12288]{0}', space=vmem, size = 0x3000, scoped, tag = 'output window, operand 0, single buffered']
    %7 = vsyncpa [#allocation3], 0
    %8 = vsyncpa [#allocation6], 0
    %9 = vsyncpa [#allocation4], 0
    // Predicated region
    $region2: #{tpu_custom_call.1} parent=1 // pred_check
      _
    $region3: #{tpu_custom_call.1} parent=1 // pred_check_branch
      %11 = sbr.rel (0) target = $region5
    $region4: #{tpu_custom_call.1} parent=1 // pred_region
      %s12 = sadd.s32 0, 0
      %p13 = scmp.lt.s32.totalorder %s12, 0
      %s14 = scalar_select %p13, %s12, 0
      %s15 = smul.u32 2, %s14
      %17 = vsyncadd [#allocation3], 0
      %s18 = smul.addr %s15, 8
      %s19 = scalar_lea.hbm %s0, %s18
      %s20 = sshll.u32 %s19, 4
      %s21 = int_to_ptr.hbm [resolvable:$true] %s20
      %s22 = sshll.u32 [#allocation2], 4
      %s23 = int_to_ptr.vmem [resolvable:$true] %s22
      %28 = dma.hbm_to_vmem [thread:$0]  %s21, 256, %s23, [#allocation3], 128, 128, 8
    $region5: #{tpu_custom_call.1} parent=1 // pred_fallthru
      _
    // Predicated region
    $region6: #{tpu_custom_call.1} parent=1 // pred_check
      _
    $region7: #{tpu_custom_call.1} parent=1 // pred_check_branch
      %30 = sbr.rel (0) target = $region9
    $region8: #{tpu_custom_call.1} parent=1 // pred_region
      %s31 = sadd.s32 0, 0
      %p32 = scmp.lt.s32.totalorder %s31, 0
      %s33 = scalar_select %p32, %s31, 0
      %s34 = smul.u32 2, %s33
      %36 = vsyncadd [#allocation6], 0
      %s37 = smul.addr %s34, 8
      %s38 = scalar_lea.hbm %s1, %s37
      %s39 = sshll.u32 %s38, 4
      %s40 = int_to_ptr.hbm [resolvable:$true] %s39
      %s41 = sshll.u32 [#allocation5], 4
      %s42 = int_to_ptr.vmem [resolvable:$true] %s41
      %47 = dma.hbm_to_vmem [thread:$0]  %s40, 256, %s42, [#allocation6], 128, 128, 8
    $region9: #{tpu_custom_call.1} parent=1 // pred_fallthru
      _
    // Predicated region
    $region10: #{tpu_custom_call.1} parent=1 // pred_check
      _
    $region11: #{tpu_custom_call.1} parent=1 // pred_check_branch
      %49 = sbr.rel (0) target = $region13
    $region12: #{tpu_custom_call.1} parent=1 // pred_region
      %51 = dma.done [#allocation3], 256
    $region13: #{tpu_custom_call.1} parent=1 // pred_fallthru
      _
    // Predicated region
    $region14: #{tpu_custom_call.1} parent=1 // pred_check
      _
    $region15: #{tpu_custom_call.1} parent=1 // pred_check_branch
      %53 = sbr.rel (0) target = $region17
    $region16: #{tpu_custom_call.1} parent=1 // pred_region
      %55 = dma.done [#allocation6], 256
    $region17: #{tpu_custom_call.1} parent=1 // pred_fallthru
      _
    %s56 = sadd.s32 0, 0
    %p57 = scmp.lt.s32.totalorder %s56, 0
    %s58 = scalar_select %p57, %s56, 0
    %s59 = smul.u32 2, %s58
    %s60 = sadd.s32 0, 0
    %p61 = scmp.lt.s32.totalorder %s60, 0
    %s62 = scalar_select %p61, %s60, 0
    %s63 = smul.u32 2, %s62
    %p64 = scmp.eq.s32.totalorder 0, 0
    // Predicated region
    $region18: #{tpu_custom_call.1} parent=1 // pred_check
      %p65 = pneg %p64
    $region19: #{tpu_custom_call.1} parent=1 // pred_check_branch
      %67 = sbr.rel (%p65) target = $region21
    $region20: #{tpu_custom_call.1} parent=1 // pred_region
      %68 = vst [vmem:[#allocation7] sm:$0xff] 0.0
      %69 = vst [vmem:[#allocation7 + $0x8] sm:$0xff] 0.0
      %70 = vst [vmem:[#allocation7 + $0x10] sm:$0xff] 0.0
    $region21: #{tpu_custom_call.1} parent=1 // pred_fallthru
      _
    %v71 = vld [vmem:[#allocation2] sm:$0xff]
    %v72 = vld [vmem:[#allocation2 + $0x8] sm:$0xff]
    %v73 = vld [vmem:[#allocation5] sm:$0xff]
    %v74 = vld [vmem:[#allocation5 + $0x8] sm:$0xff]
    %v75 = vld [vmem:[#allocation7] sm:$0xff]
    %v76 = vmul.f32 %v71, %v73
    %v77 = vmul.f32 %v72, %v74
    %v78 = vadd.f32 %v76, %v77
    %v79 = vadd.f32 %v75, %v78
    %80 = vst [vmem:[#allocation7] sm:$0xff] %v79
    %s81 = scalar_lea.vmem [#allocation7], 8
    %v82 = vld [vmem:[%s81] sm:$0xff]
    %v83 = vadd.f32 %v71, %v72
    %v84 = vadd.f32 %v82, %v83
    %85 = vst [vmem:[%s81] sm:$0xff] %v84
    %s86 = scalar_lea.vmem [#allocation7], 16
    %v87 = vld [vmem:[%s86] sm:$0xff]
    %v88 = vadd.f32 %v73, %v74
    %v89 = vadd.f32 %v87, %v88
    %90 = vst [vmem:[%s86] sm:$0xff] %v89
    // Predicated region
    $region22: #{tpu_custom_call.1} parent=1 // pred_check
      _
    $region23: #{tpu_custom_call.1} parent=1 // pred_check_branch
      %92 = sbr.rel (0) target = $region25
    $region24: #{tpu_custom_call.1} parent=1 // pred_region
      %94 = vsyncadd [#allocation4], 0
      %s95 = sshll.u32 [#allocation7], 4
      %s96 = int_to_ptr.vmem [resolvable:$true] %s95
      %s97 = sshll.u32 %s2, 4
      %s98 = int_to_ptr.hbm [resolvable:$true] %s97
      %103 = dma.vmem_to_hbm [thread:$0]  %s96, 384, %s98, [#allocation4], 128, 128, 8
    $region25: #{tpu_custom_call.1} parent=1 // pred_fallthru
      _
    // Predicated region
    $region26: #{tpu_custom_call.1} parent=1 // pred_check
      _
    $region27: #{tpu_custom_call.1} parent=1 // pred_check_branch
      %105 = sbr.rel (0) target = $region29
    $region28: #{tpu_custom_call.1} parent=1 // pred_region
      %107 = dma.done [#allocation4], 384
    $region29: #{tpu_custom_call.1} parent=1 // pred_fallthru
      _
    %108 = vsyncpa [#allocation3], 1
    %109 = vsyncpa [#allocation6], 1
    %110 = vsyncpa [#allocation4], 1

</llo_original>
